<compile_context>
chip_gen: v5e
topology: v5e:2x2
jax: 0.10.0
libtpu: 0.0.40
codegen_flags: <defaults>
</compile_context>

<pallas_src>
import jax
import jax.numpy as jnp
from jax.experimental import pallas as pl
from jax.experimental.pallas import tpu as pltpu

EPS = 1e-3       # nn.BatchNorm2d(3, eps=0.001)
COUT_PAD = 8     # Cout 3 -> 8 sublanes (f32 sublane tile)
CIN_PAD = 8      # Cin 6 -> 8 sublanes, keeps the in-kernel patch concat 8-aligned


def _make_kernel(W, KH, KW, cin, m_compute, m_out):
    """Fused per-image kernel: in-kernel im2col + single MXU dot + bias + ReLU.

    x_ref : [1, cin, H*W]              f32  (spatial in lanes; straight NCHW reshape)
    w_ref : [COUT_PAD, KH*KW*CIN_PAD]  bf16 (BN scale folded, Cout/Cin zero-padded)
    b_ref : [COUT_PAD, 1]              f32  (folded conv bias + BN shift)
    o_ref : [1, COUT_PAD, m_out]       f32  (m_out = OH*W; junk cols stripped in wrapper)
    """
    def kernel(x_ref, w_ref, b_ref, o_ref):
        x = x_ref[0]                                                   # [cin, H*W] f32
        if cin != CIN_PAD:                                             # pad channels in VMEM (tiny)
            x = jnp.concatenate(
                [x, jnp.zeros((CIN_PAD - cin, x.shape[1]), x.dtype)], axis=0)
        # im2col in-kernel: KH*KW static lane shifts, stacked along sublanes.
        slabs = [x[:, kh * W + kw: kh * W + kw + m_compute]            # each [CIN_PAD, m]
                 for kh in range(KH) for kw in range(KW)]
        patch = jnp.concatenate(slabs, axis=0).astype(jnp.bfloat16)    # [KH*KW*CIN_PAD, m]
        # Single MXU dot: spatial (m ~= 222) fills the MXU column dimension.
        acc = jnp.dot(w_ref[...], patch,
                      preferred_element_type=jnp.float32)              # [COUT_PAD, m] f32
        acc = jnp.maximum(acc + b_ref[...], 0.0)                       # bias + ReLU
        if m_out != m_compute:                                         # lane-pad to OH*W pitch
            acc = jnp.concatenate(
                [acc, jnp.zeros((COUT_PAD, m_out - m_compute), acc.dtype)], axis=1)
        o_ref[0] = acc

    return kernel


def conv_bn_relu(x_nchw, w_oihw, conv_b, gamma, beta, run_mean, run_var):
    N, Cin, H, W = x_nchw.shape
    Cout, _, KH, KW = w_oihw.shape
    OH, OW = H - KH + 1, W - KW + 1            # stride=1, padding=0
    HW = H * W
    m_out = OH * W                             # output row pitch (cols ow>=OW are junk)
    m_compute = OH * W - (KW - 1)              # max slice length keeping all taps in-bounds;
                                               # still covers every valid oh*W+ow (max = OH*W-KW)

    # ---- activation: pure reshape of NCHW (no transpose / pad -> no extra HBM pass)
    x3 = x_nchw.reshape(N, Cin, HW).astype(jnp.float32)

    # ---- fold eval-mode BN + conv bias into weights/bias; channels -> sublanes
    inv_std = jax.lax.rsqrt(run_var + EPS)
    scale = gamma * inv_std                                                 # [Cout]
    bias = (conv_b - run_mean) * scale + beta                               # [Cout]
    wk = jnp.transpose(w_oihw, (0, 2, 3, 1)) * scale[:, None, None, None]   # [Cout,KH,KW,Cin]
    wk = jnp.pad(wk, ((0, COUT_PAD - Cout), (0, 0), (0, 0), (0, CIN_PAD - Cin)))
    wk = wk.reshape(COUT_PAD, KH * KW * CIN_PAD).astype(jnp.bfloat16)       # [8, 72]
    bias_p = jnp.pad(bias, (0, COUT_PAD - Cout)).reshape(COUT_PAD, 1).astype(jnp.float32)

    kernel = _make_kernel(W=W, KH=KH, KW=KW, cin=Cin,
                          m_compute=m_compute, m_out=m_out)

    flops = 2 * N * OH * OW * Cout * Cin * KH * KW
    bytes_accessed = (N * Cin * HW * 4 + wk.size * 2 + bias_p.size * 4
                      + N * COUT_PAD * m_out * 4)

    out = pl.pallas_call(
        kernel,
        out_shape=jax.ShapeDtypeStruct((N, COUT_PAD, m_out), jnp.float32),
        grid_spec=pl.GridSpec(
            grid=(N,),   # one image per step; add a parallel OH*W row-tile axis at real sizes
            in_specs=[
                pl.BlockSpec((1, Cin, HW), lambda n: (n, 0, 0)),
                pl.BlockSpec((COUT_PAD, KH * KW * CIN_PAD), lambda n: (0, 0)),
                pl.BlockSpec((COUT_PAD, 1), lambda n: (0, 0)),
            ],
            out_specs=pl.BlockSpec((1, COUT_PAD, m_out), lambda n: (n, 0, 0)),
        ),
        compiler_params=pltpu.CompilerParams(
            dimension_semantics=("parallel",),   # images shard across TCs on v7x
        ),
        cost_estimate=pl.CostEstimate(
            flops=flops, transcendentals=0, bytes_accessed=bytes_accessed),
    )(x3, wk, bias_p)

    # [N, 8, OH*W] -> [N, 8, OH, W] -> strip padded channels & junk columns -> NCHW directly
    out = out.reshape(N, COUT_PAD, OH, W)[:, :Cout, :, :OW]
    return out.astype(x_nchw.dtype)


def _reference(x_nchw, w_oihw, conv_b, gamma, beta, run_mean, run_var):
    y = jax.lax.conv_general_dilated(
        x_nchw, w_oihw, window_strides=(1, 1), padding="VALID",
        dimension_numbers=("NCHW", "OIHW", "NCHW"))
    y = y + conv_b[None, :, None, None]
    y = (y - run_mean[None, :, None, None]) / jnp.sqrt(run_var[None, :, None, None] + EPS)
    y = y * gamma[None, :, None, None] + beta[None, :, None, None]
    return jnp.maximum(y, 0.0)


if __name__ == "__main__":
    key = jax.random.PRNGKey(0)
    k_x, k_w, k_b, k_g, k_be, k_m, k_v = jax.random.split(key, 7)

    # Module implies Cin=6, Cout=3, kernel 3x3; small spatial size.
    N, Cin, H, W = 2, 6, 16, 16
    Cout, KH, KW = 3, 3, 3
    fan_in = Cin * KH * KW
    bound = 1.0 / jnp.sqrt(fan_in)

    x = jax.random.normal(k_x, (N, Cin, H, W), dtype=jnp.float32)
    w = jax.random.uniform(k_w, (Cout, Cin, KH, KW), jnp.float32, -bound, bound)
    conv_b = jax.random.uniform(k_b, (Cout,), jnp.float32, -bound, bound)
    gamma = 1.0 + 0.1 * jax.random.normal(k_g, (Cout,), jnp.float32)
    beta = 0.1 * jax.random.normal(k_be, (Cout,), jnp.float32)
    run_mean = 0.1 * jax.random.normal(k_m, (Cout,), jnp.float32)
    run_var = jnp.abs(jax.random.normal(k_v, (Cout,), jnp.float32)) + 0.5

    out = conv_bn_relu(x, w, conv_b, gamma, beta, run_mean, run_var)
    out = jax.block_until_ready(out)

    ref = _reference(x, w, conv_b, gamma, beta, run_mean, run_var)
    assert out.shape == (N, Cout, H - KH + 1, W - KW + 1), out.shape
    assert jnp.allclose(out, ref, atol=2e-2, rtol=2e-2), float(jnp.max(jnp.abs(out - ref)))

    print("KERNEL_OK")
</pallas_src>

<mosaic_0001>
module attributes {stable_mosaic.version = 11 : i64} {
  func.func @kernel(%arg0: i32, %arg1: memref<1x6x256xf32, #tpu.memory_space<vmem>>, %arg2: memref<8x72xbf16, #tpu.memory_space<vmem>>, %arg3: memref<8x1xf32, #tpu.memory_space<vmem>>, %arg4: memref<1x8x224xf32, #tpu.memory_space<vmem>>) attributes {dimension_semantics = [#tpu.dimension_semantics<parallel>], iteration_bounds = array<i64: 2>, scalar_prefetch = 0 : i64, scratch_operands = 0 : i64, tpu.core_type = #tpu.core_type<tc>, window_params = [{transform_indices = @transform_0, window_bounds = array<i64: 1, 6, 256>}, {pipeline_mode = #tpu.pipeline_mode<synchronous>, transform_indices = @transform_1, window_bounds = array<i64: 8, 72>}, {pipeline_mode = #tpu.pipeline_mode<synchronous>, transform_indices = @transform_2, window_bounds = array<i64: 8, 1>}, {transform_indices = @transform_3, window_bounds = array<i64: 1, 8, 224>}]} {
    %c0 = arith.constant 0 : index
    %c0_0 = arith.constant 0 : index
    %c0_1 = arith.constant 0 : index
    %0 = vector.load %arg1[%c0, %c0_0, %c0_1] : memref<1x6x256xf32, #tpu.memory_space<vmem>>, vector<1x6x256xf32>
    %1 = vector.shape_cast %0 : vector<1x6x256xf32> to vector<6x256xf32>
    %cst = arith.constant 0.000000e+00 : f32
    %2 = vector.broadcast %cst : f32 to vector<2x256xf32>
    %3 = tpu.concatenate %1, %2 in 0 : vector<6x256xf32>, vector<2x256xf32> -> vector<8x256xf32>
    %4 = vector.extract_strided_slice %3 {offsets = [0, 0], sizes = [8, 222], strides = [1, 1]} : vector<8x256xf32> to vector<8x222xf32>
    %5 = vector.extract_strided_slice %3 {offsets = [0, 1], sizes = [8, 222], strides = [1, 1]} : vector<8x256xf32> to vector<8x222xf32>
    %6 = vector.extract_strided_slice %3 {offsets = [0, 2], sizes = [8, 222], strides = [1, 1]} : vector<8x256xf32> to vector<8x222xf32>
    %7 = vector.extract_strided_slice %3 {offsets = [0, 16], sizes = [8, 222], strides = [1, 1]} : vector<8x256xf32> to vector<8x222xf32>
    %8 = vector.extract_strided_slice %3 {offsets = [0, 17], sizes = [8, 222], strides = [1, 1]} : vector<8x256xf32> to vector<8x222xf32>
    %9 = vector.extract_strided_slice %3 {offsets = [0, 18], sizes = [8, 222], strides = [1, 1]} : vector<8x256xf32> to vector<8x222xf32>
    %10 = vector.extract_strided_slice %3 {offsets = [0, 32], sizes = [8, 222], strides = [1, 1]} : vector<8x256xf32> to vector<8x222xf32>
    %11 = vector.extract_strided_slice %3 {offsets = [0, 33], sizes = [8, 222], strides = [1, 1]} : vector<8x256xf32> to vector<8x222xf32>
    %12 = vector.extract_strided_slice %3 {offsets = [0, 34], sizes = [8, 222], strides = [1, 1]} : vector<8x256xf32> to vector<8x222xf32>
    %13 = tpu.concatenate %4, %5, %6, %7, %8, %9, %10, %11, %12 in 0 : vector<8x222xf32>, vector<8x222xf32>, vector<8x222xf32>, vector<8x222xf32>, vector<8x222xf32>, vector<8x222xf32>, vector<8x222xf32>, vector<8x222xf32>, vector<8x222xf32> -> vector<72x222xf32>
    %14 = arith.truncf %13 : vector<72x222xf32> to vector<72x222xbf16>
    %c0_2 = arith.constant 0 : index
    %c0_3 = arith.constant 0 : index
    %15 = vector.load %arg2[%c0_2, %c0_3] : memref<8x72xbf16, #tpu.memory_space<vmem>>, vector<8x72xbf16>
    %cst_4 = arith.constant dense<0.000000e+00> : vector<8x222xf32>
    %16 = tpu.matmul %15, %14, %cst_4 {dimension_numbers = #tpu.dot_dimension_numbers<[1], [0], [0], [1], [0, 0, 1, 1], [], []>} : vector<8x72xbf16>, vector<72x222xbf16>, vector<8x222xf32> -> vector<8x222xf32>
    %c0_5 = arith.constant 0 : index
    %c0_6 = arith.constant 0 : index
    %17 = vector.load %arg3[%c0_5, %c0_6] : memref<8x1xf32, #tpu.memory_space<vmem>>, vector<8x1xf32>
    %18 = vector.broadcast %17 : vector<8x1xf32> to vector<8x222xf32>
    %19 = arith.addf %16, %18 : vector<8x222xf32>
    %cst_7 = arith.constant 0.000000e+00 : f32
    %20 = vector.broadcast %cst_7 : f32 to vector<8x222xf32>
    %21 = arith.maximumf %19, %20 : vector<8x222xf32>
    %cst_8 = arith.constant 0.000000e+00 : f32
    %22 = vector.broadcast %cst_8 : f32 to vector<8x2xf32>
    %23 = tpu.concatenate %21, %22 in 1 : vector<8x222xf32>, vector<8x2xf32> -> vector<8x224xf32>
    %c0_9 = arith.constant 0 : index
    %c0_10 = arith.constant 0 : index
    %c0_11 = arith.constant 0 : index
    %24 = vector.load %arg4[%c0_9, %c0_10, %c0_11] : memref<1x8x224xf32, #tpu.memory_space<vmem>>, vector<1x8x224xf32>
    %25 = vector.shape_cast %24 : vector<1x8x224xf32> to vector<8x224xf32>
    %26 = vector.shape_cast %23 : vector<8x224xf32> to vector<1x8x224xf32>
    tpu.vector_store %arg4[%c0_9, %c0_10, %c0_11], %26 {strides = array<i32>} : memref<1x8x224xf32, #tpu.memory_space<vmem>>, vector<1x8x224xf32>,
    return
  }
  func.func @transform_0(%arg0: i32) -> (i32, i32, i32) {
    %c0_i32 = arith.constant 0 : i32
    %c0_i32_0 = arith.constant 0 : i32
    %c0_i32_1 = arith.constant 0 : i32
    return %arg0, %c0_i32, %c0_i32_0 : i32, i32, i32
  }
  func.func @transform_1(%arg0: i32) -> (i32, i32) {
    %c0_i32 = arith.constant 0 : i32
    %c0_i32_0 = arith.constant 0 : i32
    %c0_i32_1 = arith.constant 0 : i32
    return %c0_i32, %c0_i32_0 : i32, i32
  }
  func.func @transform_2(%arg0: i32) -> (i32, i32) {
    %c0_i32 = arith.constant 0 : i32
    %c0_i32_0 = arith.constant 0 : i32
    %c0_i32_1 = arith.constant 0 : i32
    return %c0_i32, %c0_i32_0 : i32, i32
  }
  func.func @transform_3(%arg0: i32) -> (i32, i32, i32) {
    %c0_i32 = arith.constant 0 : i32
    %c0_i32_0 = arith.constant 0 : i32
    %c0_i32_1 = arith.constant 0 : i32
    return %arg0, %c0_i32, %c0_i32_0 : i32, i32, i32
  }
}

</mosaic_0001>

<llo_original>
// kernel: tpu_custom_call.1
$region0: #{tpu_custom_call.1}
  #allocation0 [shape = 'u32[]', space=smem, size = 0x4, offset = 0x4, fixed_abs, tag = 'smem constant byte address 0x4 - core index']
  #allocation1 [shape = 'u32[72,128]{1,0:T(1,128)}', space=vmem, size = 0x9000, scoped, tag = 'internal scratch']
  %s0 = inlined_call_operand.vmem [shape: f32[2,6,256], index: 0, kind: input, shape index: {}]
  %s1 = inlined_call_operand.vmem [shape: bf16[8,72], index: 1, kind: input, shape index: {}]
  %s2 = inlined_call_operand.vmem [shape: f32[8,1], index: 2, kind: input, shape index: {}]
  %s3 = inlined_call_operand.hbm [shape: f32[2,8,224], index: 3, kind: output, shape index: {}]
  %s4 = sld [smem:[#allocation0]]
  $region45: #{tpu_custom_call.1} parent=0
    _
  %s6 = ssub.s32 1, %s4
  %s7 = scalar_select 0, %s6, %s4
  $region1: #{tpu_custom_call.1} parent=0
    #allocation2 [shape = 'u8[16384]{0}', space=vmem, size = 0x4000, scoped, tag = 'output window, operand 0']
    #allocation3 [shape = 's32[2]{0}', space=sflag, size = 0x8, scoped, tag = 'scoped memory for tpu_custom_call.1']
    %8 = vsyncpa [#allocation3], 0
    %s9 = scalar_lea.sflag [#allocation3], 1
    %10 = vsyncpa %s9, 0
    loop: start=0, step=1, limit=4
    $region2: #{tpu_custom_call.1} parent=1 // loop_pre_header
      _
    $region3: #{tpu_custom_call.1} parent=1 // loop_header
      %s12 = sphi 0, %s16
      %p13 = scmp.ge.s32.totalorder %s12, 4
      %s22 = sphi 0, %s24
      %s25 = sphi 0, %s22
      %s26 = sphi 0, %s25
      %s42 = sphi 0, %s26
      %s46 = sphi 0, %s46
      %s48 = sphi 0, %s46
      %s49 = sphi 0, %s48
      %s63 = sphi 0, %s49
      %s67 = sphi 0, %s67
      %s69 = sphi 0, %s67
      %s70 = sphi 0, %s69
      %s84 = sphi 0, %s70
      %s90 = sphi 0, %s92
      %s93 = sphi 0, %s90
      %s94 = sphi 0, %s93
      %s110 = sphi 0, %s94
    $region4: #{tpu_custom_call.1} parent=1 // loop_header_branch
      %15 = sbr.rel (%p13) target = $region8
    $region5: #{tpu_custom_call.1} parent=1 // loop_body
      %s17 = ssub.s32 %s12, 1
      %s18 = ssub.s32 %s12, 2
      %s19 = sadd.s32 %s12, 1
      %s20 = ssub.s32 %s12, %s19
      %p21 = scmp.eq.s32.totalorder %s20, 0
      %s23 = sadd.s32 %s22, 1
      %s24 = scalar_select %p21, %s22, %s23
      %p27 = pneg %p21
      %p28 = scmp.eq.s32.totalorder %s12, 1
      %p29 = por %p27, %p28
      %p30 = scmp.ne.s32.totalorder %s22, %s25
      %p31 = scmp.eq.s32.totalorder %s12, 0
      %p32 = por %p30, %p31
      %p33 = scmp.ne.s32.totalorder %s22, %s25
      %p34 = scmp.eq.s32.totalorder %s17, 1
      %p35 = por %p33, %p34
      %p36 = scmp.ne.s32.totalorder %s25, %s26
      %p37 = scmp.eq.s32.totalorder %s17, 0
      %p38 = por %p36, %p37
      %p39 = scmp.ne.s32.totalorder %s25, %s26
      %p40 = scmp.eq.s32.totalorder %s18, 1
      %p41 = por %p39, %p40
      %p43 = scmp.ne.s32.totalorder %s26, %s42
      %p44 = scmp.eq.s32.totalorder %s18, 0
      %p45 = por %p43, %p44
      %s47 = sadd.s32 %s46, 1
      %p50 = scmp.eq.s32.totalorder %s12, 1
      %p51 = scmp.ne.s32.totalorder %s46, %s48
      %p52 = scmp.eq.s32.totalorder %s12, 0
      %p53 = por %p51, %p52
      %p54 = scmp.ne.s32.totalorder %s46, %s48
      %p55 = scmp.eq.s32.totalorder %s17, 1
      %p56 = por %p54, %p55
      %p57 = scmp.ne.s32.totalorder %s48, %s49
      %p58 = scmp.eq.s32.totalorder %s17, 0
      %p59 = por %p57, %p58
      %p60 = scmp.ne.s32.totalorder %s48, %s49
      %p61 = scmp.eq.s32.totalorder %s18, 1
      %p62 = por %p60, %p61
      %p64 = scmp.ne.s32.totalorder %s49, %s63
      %p65 = scmp.eq.s32.totalorder %s18, 0
      %p66 = por %p64, %p65
      %s68 = sadd.s32 %s67, 1
      %p71 = scmp.eq.s32.totalorder %s12, 1
      %p72 = scmp.ne.s32.totalorder %s67, %s69
      %p73 = scmp.eq.s32.totalorder %s12, 0
      %p74 = por %p72, %p73
      %p75 = scmp.ne.s32.totalorder %s67, %s69
      %p76 = scmp.eq.s32.totalorder %s17, 1
      %p77 = por %p75, %p76
      %p78 = scmp.ne.s32.totalorder %s69, %s70
      %p79 = scmp.eq.s32.totalorder %s17, 0
      %p80 = por %p78, %p79
      %p81 = scmp.ne.s32.totalorder %s69, %s70
      %p82 = scmp.eq.s32.totalorder %s18, 1
      %p83 = por %p81, %p82
      %p85 = scmp.ne.s32.totalorder %s70, %s84
      %p86 = scmp.eq.s32.totalorder %s18, 0
      %p87 = por %p85, %p86
      %s88 = ssub.s32 %s12, %s19
      %p89 = scmp.eq.s32.totalorder %s88, 0
      %s91 = sadd.s32 %s90, 1
      %s92 = scalar_select %p89, %s90, %s91
      %p95 = pneg %p89
      %p96 = scmp.eq.s32.totalorder %s12, 1
      %p97 = por %p95, %p96
      %p98 = scmp.ne.s32.totalorder %s90, %s93
      %p99 = scmp.eq.s32.totalorder %s12, 0
      %p100 = por %p98, %p99
      %p101 = scmp.ne.s32.totalorder %s90, %s93
      %p102 = scmp.eq.s32.totalorder %s17, 1
      %p103 = por %p101, %p102
      %p104 = scmp.ne.s32.totalorder %s93, %s94
      %p105 = scmp.eq.s32.totalorder %s17, 0
      %p106 = por %p104, %p105
      %p107 = scmp.ne.s32.totalorder %s93, %s94
      %p108 = scmp.eq.s32.totalorder %s18, 1
      %p109 = por %p107, %p108
      %p111 = scmp.ne.s32.totalorder %s94, %s110
      %p112 = scmp.eq.s32.totalorder %s18, 0
      %p113 = por %p111, %p112
      %p114 = scmp.le.s32.totalorder 1, %s12
      %p115 = scmp.lt.s32.totalorder %s12, 3
      %p116 = pnand %p114, %p115
      %p117 = pneg %p116
      // Predicated region
      $region9: #{tpu_custom_call.1} parent=5 // pred_check
        _
      $region10: #{tpu_custom_call.1} parent=5 // pred_check_branch
        %119 = sbr.rel (%p116) target = $region12
      $region11: #{tpu_custom_call.1} parent=5 // pred_region
        %s120 = ssub.s32 %s12, 1
        // Predicated region
        $region13: #{tpu_custom_call.1} parent=11 // pred_check
          %p121 = pneg %p59
        $region14: #{tpu_custom_call.1} parent=11 // pred_check_branch
          %123 = sbr.rel (%p121) target = $region16
        $region15: #{tpu_custom_call.1} parent=11 // pred_region
          _
        $region16: #{tpu_custom_call.1} parent=11 // pred_fallthru
          _
        // Predicated region
        $region17: #{tpu_custom_call.1} parent=11 // pred_check
          %p124 = pneg %p80
        $region18: #{tpu_custom_call.1} parent=11 // pred_check_branch
          %126 = sbr.rel (%p124) target = $region20
        $region19: #{tpu_custom_call.1} parent=11 // pred_region
          _
        $region20: #{tpu_custom_call.1} parent=11 // pred_fallthru
          _
      $region12: #{tpu_custom_call.1} parent=5 // pred_fallthru
        _
      %p127 = scmp.lt.s32.totalorder %s12, 2
      // Predicated region
      $region21: #{tpu_custom_call.1} parent=5 // pred_check
        %p128 = pneg %p127
      $region22: #{tpu_custom_call.1} parent=5 // pred_check_branch
        %130 = sbr.rel (%p128) target = $region24
      $region23: #{tpu_custom_call.1} parent=5 // pred_region
        // Predicated region
        $region25: #{tpu_custom_call.1} parent=23 // pred_check
          %p131 = pneg %p32
        $region26: #{tpu_custom_call.1} parent=23 // pred_check_branch
          %133 = sbr.rel (%p131) target = $region28
        $region27: #{tpu_custom_call.1} parent=23 // pred_region
          %p134 = scmp.lt.s32.totalorder %s12, 1
          %s135 = scalar_select %p134, %s12, 1
          %s136 = smul.addr %s135, 2
          %s137 = smul.addr %s136, 8
          %s138 = scalar_lea.vmem %s0, %s137
        $region28: #{tpu_custom_call.1} parent=23 // pred_fallthru
          _
      $region24: #{tpu_custom_call.1} parent=5 // pred_fallthru
        _
      %p139 = scmp.le.s32.totalorder 1, %s12
      %p140 = scmp.lt.s32.totalorder %s12, 3
      %p141 = pnand %p139, %p140
      %p142 = pneg %p141
      // Predicated region
      $region29: #{tpu_custom_call.1} parent=5 // pred_check
        _
      $region30: #{tpu_custom_call.1} parent=5 // pred_check_branch
        %144 = sbr.rel (%p141) target = $region32
      $region31: #{tpu_custom_call.1} parent=5 // pred_region
        %s145 = ssub.s32 %s12, 1
        %p146 = scmp.lt.s32.totalorder %s17, 1
        %s147 = scalar_select %p146, %s17, 1
        %s148 = smul.addr %s147, 2
        %s149 = smul.addr %s148, 8
        %s150 = scalar_lea.vmem %s0, %s149
        %p151 = pneg %p38
        %p152 = pneg %p35
        %p153 = pneg %p59
        %p154 = pneg %p56
        %p155 = pneg %p80
        %p156 = pneg %p77
        %p157 = pneg %p106
        %p158 = pneg %p103
        %s159 = sand.u32 %s93, 1
        %s160 = scalar_lea.sflag [#allocation3], %s159
        %s161 = sand.u32 %s93, 1
        %s162 = smul.addr %s161, 16
        %s163 = scalar_lea.vmem [#allocation2], %s162
        %p164 = scmp.lt.s32.totalorder %s17, 1
        %s165 = scalar_select %p164, %s17, 1
        %s166 = smul.addr %s165, 2
        %s167 = smul.addr %s166, 8
        %s168 = scalar_lea.vmem %s0, %s167
        %v170 = vld [vmem:[%s168] sm:$0x3f]
        %v171 = vld [vmem:[%s168 + $0x8] sm:$0x3f]
        %vm172 = vcmask 1045504
        %v173 = vsel %vm172, %v170, 0.0
        %v174 = vsel %vm172, %v171, 0.0
        %177 = vrot.lane.b32.xlu0 %v173, 127
        %v178 = vpop.permute.xlu0 %177
        %179 = vrot.lane.b32.xlu0 %v174, 127
        %v180 = vpop.permute.xlu0 %179
        %vm181 = vcmask 1039360
        %v182 = vsel %vm181, %v178, %v180
        %185 = vrot.lane.b32.xlu0 %v173, 126
        %v186 = vpop.permute.xlu0 %185
        %187 = vrot.lane.b32.xlu0 %v174, 126
        %v188 = vpop.permute.xlu0 %187
        %vm189 = vcmask 1031168
        %v190 = vsel %vm189, %v186, %v188
        %193 = vrot.lane.b32.xlu0 %v173, 112
        %v194 = vpop.permute.xlu0 %193
        %195 = vrot.lane.b32.xlu0 %v174, 112
        %v196 = vpop.permute.xlu0 %195
        %vm197 = vcmask 916480
        %v198 = vsel %vm197, %v194, %v196
        %201 = vrot.lane.b32.xlu0 %v173, 111
        %v202 = vpop.permute.xlu0 %201
        %203 = vrot.lane.b32.xlu0 %v174, 111
        %v204 = vpop.permute.xlu0 %203
        %vm205 = vcmask 908288
        %v206 = vsel %vm205, %v202, %v204
        %209 = vrot.lane.b32.xlu0 %v173, 110
        %v210 = vpop.permute.xlu0 %209
        %211 = vrot.lane.b32.xlu0 %v174, 110
        %v212 = vpop.permute.xlu0 %211
        %vm213 = vcmask 900096
        %v214 = vsel %vm213, %v210, %v212
        %217 = vrot.lane.b32.xlu0 %v173, 96
        %v218 = vpop.permute.xlu0 %217
        %219 = vrot.lane.b32.xlu0 %v174, 96
        %v220 = vpop.permute.xlu0 %219
        %vm221 = vcmask 785408
        %v222 = vsel %vm221, %v218, %v220
        %225 = vrot.lane.b32.xlu0 %v173, 95
        %v226 = vpop.permute.xlu0 %225
        %227 = vrot.lane.b32.xlu0 %v174, 95
        %v228 = vpop.permute.xlu0 %227
        %vm229 = vcmask 777216
        %v230 = vsel %vm229, %v226, %v228
        %233 = vrot.lane.b32.xlu0 %v173, 94
        %v234 = vpop.permute.xlu0 %233
        %235 = vrot.lane.b32.xlu0 %v174, 94
        %v236 = vpop.permute.xlu0 %235
        %vm237 = vcmask 769024
        %v238 = vsel %vm237, %v234, %v236
        %v241 = vpack.c.bf16 %v182, %v173
        %v242 = vpack.c.bf16 %v180, %v174
        %v243 = vpack.c.bf16 %v198, %v190
        %v244 = vpack.c.bf16 %v196, %v188
        %v245 = vpack.c.bf16 %v214, %v206
        %v246 = vpack.c.bf16 %v212, %v204
        %v247 = vpack.c.bf16 %v230, %v222
        %v248 = vpack.c.bf16 %v228, %v220
        %v249 = vpack.c.bf16 %v238, %v238
        %v250 = vpack.c.bf16 %v236, %v236
        %v251 = vld [vmem:[%s1] sm:$0xf]
        %v252 = vld [vmem:[%s2] sm:$0xff]
        %254 = vset.pattern.permute.xlu0 0
        %255 = vperm.xlu0 %254, %v252
        %v256 = vpop.permute.xlu0 %255
        %vm258 = vcmask 588800
        %v260 = vsel %vm258, %v251, 0
        %vm262 = vcmask 1043456
        %v264 = vsel %vm262, %v249, 0
        %v267 = vsel %vm262, %v250, 0
        %269 = vmatpush.bf16.msra.mxu0 0
        %270 = vmatpush.bf16.msra.mxu0 0
        %271 = vmatpush.bf16.msra.mxu0 0
        %272 = vmatpush.bf16.msra.mxu0 %v264
        %273 = vmatpush.bf16.msra.mxu0 %v247
        %274 = vmatpush.bf16.msra.mxu0 %v245
        %275 = vmatpush.bf16.msra.mxu0 %v243
        %276 = vmatpush.bf16.msra.mxu0 %v241
        %277 = vmatmul.bf16.gmra.mxu0 %v260
        %v278 = vpop.f32.mrf.mxu0
        %v279 = vadd.f32 %v256, %v278
        %v280 = vpop.f32.mrf.mxu0
        %281 = vdwg.mxu0
        %282 = vmatpush.bf16.msra.mxu0 0
        %283 = vmatpush.bf16.msra.mxu0 0
        %284 = vmatpush.bf16.msra.mxu0 0
        %285 = vmatpush.bf16.msra.mxu0 %v267
        %286 = vmatpush.bf16.msra.mxu0 %v248
        %287 = vmatpush.bf16.msra.mxu0 %v246
        %288 = vmatpush.bf16.msra.mxu0 %v244
        %289 = vmatpush.bf16.msra.mxu0 %v242
        %290 = vmatmul.bf16.gmra.mxu0 %v260
        %v291 = vpop.f32.mrf.mxu0
        %v292 = vadd.f32 %v256, %v291
        %v293 = vpop.f32.mrf.mxu0
        %294 = vdwg.mxu0
        %v295 = vmax.f32 %v279, 0.0
        %v296 = vmax.f32 %v292, 0.0
        %v297 = vsel %vm237, %v296, 0.0
        %298 = vst [vmem:[%s163] sm:$0xff] %v295
        %299 = vst.msk [vmem:[%s163 + $0x8] sm:$0xff] %vm221, %v297
        %s300 = sand.u32 %s93, 1
        %s301 = scalar_lea.sflag [#allocation3], %s300
        %s302 = sand.u32 %s93, 1
        %s303 = smul.addr %s302, 16
        %s304 = scalar_lea.vmem [#allocation2], %s303
        // Predicated region
        $region33: #{tpu_custom_call.1} parent=31 // pred_check
          %p305 = pneg %p103
        $region34: #{tpu_custom_call.1} parent=31 // pred_check_branch
          %307 = sbr.rel (%p305) target = $region36
        $region35: #{tpu_custom_call.1} parent=31 // pred_region
          %309 = vsyncadd %s301, 0
          %s310 = smul.addr %s17, 2
          %s311 = smul.addr %s310, 8
          %s312 = scalar_lea.hbm %s3, %s311
          %s314 = sshll.u32 %s304, 4
          %s315 = int_to_ptr.vmem [resolvable:$true] %s314
          %s316 = sshll.u32 %s312, 4
          %s317 = int_to_ptr.hbm [resolvable:$true] %s316
          %319 = dma.vmem_to_hbm [thread:$0]  %s315, 256, %s317, %s301
        $region36: #{tpu_custom_call.1} parent=31 // pred_fallthru
          _
      $region32: #{tpu_custom_call.1} parent=5 // pred_fallthru
        _
      %p320 = scmp.le.s32.totalorder 2, %s12
      // Predicated region
      $region37: #{tpu_custom_call.1} parent=5 // pred_check
        %p321 = pneg %p320
      $region38: #{tpu_custom_call.1} parent=5 // pred_check_branch
        %323 = sbr.rel (%p321) target = $region40
      $region39: #{tpu_custom_call.1} parent=5 // pred_region
        %s324 = ssub.s32 %s12, 2
        // Predicated region
        $region41: #{tpu_custom_call.1} parent=39 // pred_check
          %p325 = pneg %p109
        $region42: #{tpu_custom_call.1} parent=39 // pred_check_branch
          %327 = sbr.rel (%p325) target = $region44
        $region43: #{tpu_custom_call.1} parent=39 // pred_region
          %s328 = sand.u32 %s94, 1
          %s329 = scalar_lea.sflag [#allocation3], %s328
          %s330 = sand.u32 %s94, 1
          %s331 = smul.addr %s330, 16
          %s332 = scalar_lea.vmem [#allocation2], %s331
          %334 = dma.done %s329, 256
        $region44: #{tpu_custom_call.1} parent=39 // pred_fallthru
          _
      $region40: #{tpu_custom_call.1} parent=5 // pred_fallthru
        _
    $region6: #{tpu_custom_call.1} parent=1 // loop_footer
      %s16 = sadd.s32 1, %s12
    $region7: #{tpu_custom_call.1} parent=1 // loop_footer_branch
      %11 = sbr.rel target = $region3
    $region8: #{tpu_custom_call.1} parent=1 // loop_exit
      _
    %335 = vsyncpa [#allocation3], 1
    %s336 = scalar_lea.sflag [#allocation3], 1
    %337 = vsyncpa %s336, 1

</llo_original>
